<compile_context>
chip_gen: v6e
topology: v6e:2x2x1
jax: 0.10.0
libtpu: 0.0.40
codegen_flags: <defaults>
</compile_context>

<pallas_src>
import jax
import jax.numpy as jnp
from jax.experimental import pallas as pl
from jax.experimental.pallas import tpu as pltpu

_SUB = 32          # sublane multiple satisfying f32/bf16/int8 packing alike
_MIN_BLOCKS = 8    # keep the grid long enough to pipeline / split across TCs


def _seplu_kernel(a_ref, x_ref, o_ref):
    x = x_ref[...]
    av = a_ref[0].astype(x_ref.dtype)
    # Keep the where-form (not a*max(x,0)) for exact NaN parity with
    # torch.where: NaN > 0 is False -> output 0.
    o_ref[...] = jnp.where(x > 0, av * x, jnp.zeros_like(x))


def _round_up(v, m):
    return ((v + m - 1) // m) * m


def _target_block_bytes():
    # v6e/v7x: 4 MiB per buffer (4 live buffers = 16 MiB < 32 MiB scoped VMEM
    # default).  v5e / unknown chips: 2 MiB (16 MiB scoped default on v5e).
    try:
        kind = jax.devices()[0].device_kind.lower()
    except Exception:
        return 2 * 1024 * 1024
    if any(tag in kind for tag in ("v6", "v7", "7x")):
        return 4 * 1024 * 1024
    return 2 * 1024 * 1024


def _seplu_2d(a_arr, x2d, itemsize):
    rows, W = x2d.shape
    n = rows * W

    # Block-row choice: capped by the per-buffer byte budget, but also small
    # enough to give >= _MIN_BLOCKS grid steps (pipelining / dual-TC sharding).
    tile_cap = max(_SUB, (_target_block_bytes() // (W * itemsize)) // _SUB * _SUB)
    rows_for_min = _round_up(pl.cdiv(rows, _MIN_BLOCKS), _SUB)
    block_rows = min(tile_cap, rows_for_min)
    if block_rows >= rows:
        block_rows = rows          # full-dim block: always legal (tiny arrays)
    grid = (pl.cdiv(rows, block_rows),)   # partial last block is masked

    cost = pl.CostEstimate(
        flops=2 * n,
        transcendentals=0,
        bytes_accessed=2 * n * itemsize,
    )

    return pl.pallas_call(
        _seplu_kernel,
        out_shape=jax.ShapeDtypeStruct((rows, W), x2d.dtype),
        grid_spec=pltpu.PrefetchScalarGridSpec(
            num_scalar_prefetch=0,
            grid=grid,
            in_specs=[
                pl.BlockSpec(memory_space=pltpu.MemorySpace.SMEM),   # a
                pl.BlockSpec((block_rows, W), lambda i: (i, 0)),     # x
            ],
            out_specs=pl.BlockSpec((block_rows, W), lambda i: (i, 0)),
        ),
        compiler_params=pltpu.CompilerParams(
            dimension_semantics=("parallel",)
        ),
        cost_estimate=cost,
    )(a_arr, x2d)


def seplu_pallas(x, a=1.0):
    """SepLU forward: where(x > 0, a * x, 0). x: any shape, float dtype."""
    orig_shape = x.shape
    n = x.size
    if n == 0:
        return x

    a_arr = jnp.asarray(a, dtype=jnp.float32).reshape((1,))

    # Widest power-of-two lane width (multiple of 128, up to 2048) dividing n.
    # The reshape of a contiguous flat array to (rows, W) is free, so the op
    # is exactly one pallas_call = one HBM read + one HBM write.
    W = 0
    for cand in (2048, 1024, 512, 256, 128):
        if n % cand == 0:
            W = cand
            break

    if W == 0:
        # Lane-unaligned total size (rare).  A fused XLA where() is already at
        # the 1-read + 1-write roofline and avoids pad/slice/concat passes.
        av = a_arr[0].astype(x.dtype)
        return jnp.where(x > 0, av * x, jnp.zeros_like(x))

    x2d = x.reshape(n // W, W)
    out2d = _seplu_2d(a_arr, x2d, x.dtype.itemsize)
    return out2d.reshape(orig_shape)


class SepLU:
    """JAX/Pallas equivalent of the PyTorch SepLU module (forward pass)."""

    def __init__(self, a=1.0):
        self.a = a

    def __call__(self, x):
        return seplu_pallas(x, self.a)

    # TODO(synk): backward pass (grad * where(x>0, a*x, a*exp(x))) not implemented;
    # only the forward is required here.


if __name__ == "__main__":
    key = jax.random.PRNGKey(0)
    k1, k2, k3 = jax.random.split(key, 3)

    # NCHW input, small shape (matches the PyTorch module usage).
    x = jax.random.normal(k1, (2, 4, 16, 16), dtype=jnp.float32)
    module = SepLU(a=1.0)
    out = jax.block_until_ready(module(x))
    ref = jnp.where(x > 0, 1.0 * x, 0.0)
    assert out.shape == x.shape and out.dtype == x.dtype
    assert jnp.allclose(out, ref, atol=1e-6), "mismatch vs reference (small path)"

    # Multi-block grid path (pipelined double-buffering) + non-trivial `a`
    # through the SMEM scalar path.
    x2 = jax.random.normal(k2, (16, 16, 32, 32), dtype=jnp.float32)  # 256K elems
    out2 = jax.block_until_ready(seplu_pallas(x2, 1.7))
    ref2 = jnp.where(x2 > 0, jnp.float32(1.7) * x2, 0.0)
    assert jnp.allclose(out2, ref2, atol=1e-6), "mismatch vs reference (grid path)"

    # Lane-unaligned total size -> fused single-pass jnp.where fallback.
    x3 = jax.random.normal(k3, (3, 50), dtype=jnp.float32)  # 150 elements
    out3 = jax.block_until_ready(seplu_pallas(x3, 0.5))
    ref3 = jnp.where(x3 > 0, jnp.float32(0.5) * x3, 0.0)
    assert jnp.allclose(out3, ref3, atol=1e-6), "mismatch vs reference (fallback)"

    print("KERNEL_OK")
</pallas_src>

<mosaic_0001>
module attributes {stable_mosaic.version = 11 : i64} {
  func.func @_seplu_kernel(%arg0: i32, %arg1: memref<1xf32, #tpu.memory_space<smem>>, %arg2: memref<1x2048xf32, #tpu.memory_space<vmem>>, %arg3: memref<1x2048xf32, #tpu.memory_space<vmem>>) attributes {dimension_semantics = [#tpu.dimension_semantics<parallel>], iteration_bounds = array<i64: 1>, scalar_prefetch = 0 : i64, scratch_operands = 0 : i64, tpu.core_type = #tpu.core_type<tc>, window_params = [{transform_indices = @transform_0, window_bounds = array<i64: 1>}, {transform_indices = @transform_1, window_bounds = array<i64: 1, 2048>}, {transform_indices = @transform_2, window_bounds = array<i64: 1, 2048>}]} {
    %c0 = arith.constant 0 : index
    %c0_0 = arith.constant 0 : index
    %0 = vector.load %arg2[%c0, %c0_0] : memref<1x2048xf32, #tpu.memory_space<vmem>>, vector<1x2048xf32>
    %c0_1 = arith.constant 0 : index
    %1 = memref.load %arg1[%c0_1] : memref<1xf32, #tpu.memory_space<smem>>
    %cst = arith.constant 0.000000e+00 : f32
    %2 = vector.broadcast %cst : f32 to vector<1x2048xf32>
    %3 = arith.cmpf ogt, %0, %2 : vector<1x2048xf32>
    %4 = vector.broadcast %1 : f32 to vector<1x2048xf32>
    %5 = arith.mulf %4, %0 : vector<1x2048xf32>
    %cst_2 = arith.constant 0.000000e+00 : f32
    %6 = vector.broadcast %cst_2 : f32 to vector<1x2048xf32>
    %7 = arith.select %3, %5, %6 : vector<1x2048xi1>, vector<1x2048xf32>
    %c0_3 = arith.constant 0 : index
    %c0_4 = arith.constant 0 : index
    %8 = vector.load %arg3[%c0_3, %c0_4] : memref<1x2048xf32, #tpu.memory_space<vmem>>, vector<1x2048xf32>
    tpu.vector_store %arg3[%c0_3, %c0_4], %7 {strides = array<i32>} : memref<1x2048xf32, #tpu.memory_space<vmem>>, vector<1x2048xf32>,
    return
  }
  func.func @transform_0(%arg0: i32) -> i32 {
    %c0_i32 = arith.constant 0 : i32
    %c0_i32_0 = arith.constant 0 : i32
    return %c0_i32 : i32
  }
  func.func @transform_1(%arg0: i32) -> (i32, i32) {
    %c0_i32 = arith.constant 0 : i32
    %c0_i32_0 = arith.constant 0 : i32
    return %arg0, %c0_i32 : i32, i32
  }
  func.func @transform_2(%arg0: i32) -> (i32, i32) {
    %c0_i32 = arith.constant 0 : i32
    %c0_i32_0 = arith.constant 0 : i32
    return %arg0, %c0_i32 : i32, i32
  }
}

</mosaic_0001>

<llo_original>
// kernel: tpu_custom_call.1
$region0: #{tpu_custom_call.1}
  #allocation0 [shape = 'u32[]', space=smem, size = 0x4, offset = 0x4, fixed_abs, tag = 'smem constant byte address 0x4 - core index']
  #allocation1 [shape = 'u32[144,128]{1,0:T(1,128)}', space=vmem, size = 0x12000, scoped, tag = 'internal scratch']
  #allocation2 [shape = 'f32[1]{0:T(128)S(6)}', space=smem, size = 0x200, scoped, tag = 'scoped memory for tpu_custom_call.1']
  %s0 = inlined_call_operand.<no memory space> [shape: f32[1], index: 0, kind: input, shape index: {}]
  %s1 = inlined_call_operand.hbm [shape: f32[1,2048], index: 1, kind: input, shape index: {}]
  %s2 = inlined_call_operand.hbm [shape: f32[1,2048], index: 2, kind: output, shape index: {}]
  %s3 = sld [smem:[#allocation0]]
  $region22: #{tpu_custom_call.1} parent=0
    _
  %s5 = ssub.s32 1, %s3
  %s6 = scalar_select 0, %s5, %s3
  %7 = sst [smem:[#allocation2]] %s0
  $region1: #{tpu_custom_call.1} parent=0
    #allocation3 [shape = 'u8[8192]{0}', space=vmem, size = 0x2000, scoped, tag = 'input window, operand 1, single buffered']
    #allocation4 [shape = 's32[1]{0}', space=sflag, size = 0x4, scoped, tag = 'scoped memory for tpu_custom_call.1']
    #allocation5 [shape = 's32[1]{0}', space=sflag, size = 0x4, scoped, tag = 'scoped memory for tpu_custom_call.1']
    #allocation6 [shape = 'u8[8192]{0}', space=vmem, size = 0x2000, scoped, tag = 'output window, operand 0, single buffered']
    %8 = vsyncpa [#allocation4], 0
    %9 = vsyncpa [#allocation5], 0
    // Predicated region
    $region2: #{tpu_custom_call.1} parent=1 // pred_check
      _
    $region3: #{tpu_custom_call.1} parent=1 // pred_check_branch
      %11 = sbr.rel (0) target = $region5
    $region4: #{tpu_custom_call.1} parent=1 // pred_region
      _
    $region5: #{tpu_custom_call.1} parent=1 // pred_fallthru
      _
    // Predicated region
    $region6: #{tpu_custom_call.1} parent=1 // pred_check
      _
    $region7: #{tpu_custom_call.1} parent=1 // pred_check_branch
      %13 = sbr.rel (0) target = $region9
    $region8: #{tpu_custom_call.1} parent=1 // pred_region
      %s15 = ssub.s32 256, 256
      %16 = vsyncadd [#allocation4], %s15
      %s18 = sshll.u32 [#allocation3], 4
      %s19 = int_to_ptr.vmem [resolvable:$true] %s18
      %21 = dma.hbm_to_vmem [thread:$0]  %s1, 256, %s19, [#allocation4]
    $region9: #{tpu_custom_call.1} parent=1 // pred_fallthru
      _
    // Predicated region
    $region10: #{tpu_custom_call.1} parent=1 // pred_check
      _
    $region11: #{tpu_custom_call.1} parent=1 // pred_check_branch
      %23 = sbr.rel (0) target = $region13
    $region12: #{tpu_custom_call.1} parent=1 // pred_region
      %24 = dma.done [#allocation4], 256
    $region13: #{tpu_custom_call.1} parent=1 // pred_fallthru
      _
    %v25 = vld [vmem:[#allocation3] sm:$0xff]
    %v26 = vld [vmem:[#allocation3 + $0x8] sm:$0xff]
    %s27 = sld [smem:[#allocation2]]
    %vm28 = vcmp.gt.f32.partialorder %v25, 0.0
    %vm29 = vcmp.gt.f32.partialorder %v26, 0.0
    %v30 = vstv %s27
    %v31 = vmul.f32 %v30, %v25
    %v32 = vmul.f32 %v30, %v26
    %v33 = vsel %vm28, %v31, 0.0
    %v34 = vsel %vm29, %v32, 0.0
    %35 = vst [vmem:[#allocation6] sm:$0xff] %v33
    %36 = vst [vmem:[#allocation6 + $0x8] sm:$0xff] %v34
    // Predicated region
    $region14: #{tpu_custom_call.1} parent=1 // pred_check
      _
    $region15: #{tpu_custom_call.1} parent=1 // pred_check_branch
      %38 = sbr.rel (0) target = $region17
    $region16: #{tpu_custom_call.1} parent=1 // pred_region
      %s40 = ssub.s32 256, 256
      %41 = vsyncadd [#allocation5], %s40
      %s43 = sshll.u32 [#allocation6], 4
      %s44 = int_to_ptr.vmem [resolvable:$true] %s43
      %46 = dma.vmem_to_hbm [thread:$0]  %s44, 256, %s2, [#allocation5]
    $region17: #{tpu_custom_call.1} parent=1 // pred_fallthru
      _
    // Predicated region
    $region18: #{tpu_custom_call.1} parent=1 // pred_check
      _
    $region19: #{tpu_custom_call.1} parent=1 // pred_check_branch
      %48 = sbr.rel (0) target = $region21
    $region20: #{tpu_custom_call.1} parent=1 // pred_region
      %49 = dma.done [#allocation5], 256
    $region21: #{tpu_custom_call.1} parent=1 // pred_fallthru
      _
    %50 = vsyncpa [#allocation4], 1
    %51 = vsyncpa [#allocation5], 1

</llo_original>
